<compile_context>
chip_gen: v5e
topology: v5e:2x2
jax: 0.10.0
libtpu: 0.0.40
codegen_flags: <defaults>
</compile_context>

<pallas_src>
import functools

import jax
import jax.numpy as jnp
from jax.experimental import pallas as pl
from jax.experimental.pallas import tpu as pltpu


def _round_up(x, m):
    return ((x + m - 1) // m) * m


def _choose_block_b(B, desired):
    """Pick the batch tile: one tile for small B, else a 128-multiple giving >= 2 grid steps."""
    if B <= 1024:
        # Single grid step: block == (rounded) full batch, per-step overhead paid once.
        return max(8, _round_up(B, 8))
    desired = max(128, _round_up(desired, 128))           # 128 | blk -> lane-dense out tile
    return min(desired, _round_up(pl.cdiv(B, 2), 128))    # keep grid >= 2 (v7x megacore)


def _mlp_kernel(x_ref, w1_ref, b1_ref, w2_ref, b2_ref, w3_ref, b3_ref, o_ref):
    # x_ref:  (blk, D)  f32   (cast to bf16 in-kernel; no wrapper-side HBM cast pass)
    # w1_ref: (D, H1)  bf16,  b1_ref: (1, H1) f32
    # w2_ref: (H1, H2) bf16,  b2_ref: (1, H2) f32
    # w3_ref: (1, H2)  f32   (row form of fc3 weight), b3_ref: (1, 1) f32
    # o_ref:  (1, blk) f32   (lane-dense output row)
    x = x_ref[...].astype(jnp.bfloat16)

    # Layer 1: bf16 MXU matmul, f32 accumulate, bias + ReLU in f32.
    h1 = jnp.dot(x, w1_ref[...], preferred_element_type=jnp.float32) + b1_ref[...]
    h1 = jnp.maximum(h1, 0.0)

    # Layer 2: re-cast activation to bf16 for the MXU, accumulate f32.
    h2 = jnp.dot(h1.astype(jnp.bfloat16), w2_ref[...],
                 preferred_element_type=jnp.float32) + b2_ref[...]
    h2 = jnp.maximum(h2, 0.0)

    # Layer 3 (out_features = 1): contract over H2 as (1,H2) x (blk,H2)^T -> (1, blk).
    # The result is lane-major, so the store below is a dense vst instead of 1-lane masked stores.
    z = jax.lax.dot_general(
        w3_ref[...], h2,
        dimension_numbers=(((1,), (1,)), ((), ())),
        preferred_element_type=jnp.float32,
    ) + b3_ref[...]

    o_ref[...] = jax.nn.sigmoid(z).astype(o_ref.dtype)


@functools.partial(jax.jit, static_argnames=("block_b",))
def simple_nn_forward(x, params, *, block_b=4096):
    """x: [B, input_dim] float32 -> [B, 1] float32 (matches SimpleNN.forward)."""
    w1, b1, w2, b2, w3, b3 = params
    B, D = x.shape
    H1 = w1.shape[1]
    H2 = w2.shape[1]

    blk = _choose_block_b(B, block_b)
    n_blocks = pl.cdiv(B, blk)
    B_round = n_blocks * blk

    # Only the tiny weights are cast in the wrapper; x is fed to the kernel as f32.
    w1_bf = w1.astype(jnp.bfloat16)
    w2_bf = w2.astype(jnp.bfloat16)
    w3_row = w3.T.astype(jnp.float32)            # (1, H2)
    b1_f = b1.astype(jnp.float32).reshape(1, H1)
    b2_f = b2.astype(jnp.float32).reshape(1, H2)
    b3_f = b3.astype(jnp.float32).reshape(1, 1)

    in_specs = [
        pl.BlockSpec((blk, D), lambda i: (i, 0)),    # x tile (pipelined, "parallel" axis)
        pl.BlockSpec((D, H1), lambda i: (0, 0)),     # w1 (VMEM-resident)
        pl.BlockSpec((1, H1), lambda i: (0, 0)),     # b1
        pl.BlockSpec((H1, H2), lambda i: (0, 0)),    # w2
        pl.BlockSpec((1, H2), lambda i: (0, 0)),     # b2
        pl.BlockSpec((1, H2), lambda i: (0, 0)),     # w3 row
        pl.BlockSpec((1, 1), lambda i: (0, 0)),      # b3
    ]
    out_spec = pl.BlockSpec((1, blk), lambda i: (0, i))   # lane-dense output row

    # Advisory cost model so XLA can schedule/overlap the custom call.
    flops = 2 * B_round * (D * H1 + H1 * H2 + H2)
    bytes_accessed = (
        4 * B * D                                    # f32 x
        + 2 * (D * H1 + H1 * H2)                     # bf16 w1, w2
        + 4 * (H1 + 2 * H2 + 1)                      # f32 b1, b2, w3_row, b3
        + 4 * B_round                                # f32 output row
    )
    cost = pl.CostEstimate(flops=flops, transcendentals=B_round,
                           bytes_accessed=bytes_accessed)

    # VMEM accounting (includes compiler-materialized f32 h1/h2 and in-kernel bf16 copies).
    per_step_bytes = (
        2 * blk * D * 4          # double-buffered f32 x tile
        + 2 * blk * 4            # double-buffered (1, blk) f32 out tile
        + blk * (D + H1) * 2     # bf16 copies of x and h1
        + blk * (H1 + H2) * 4    # f32 h1 / h2 intermediates
    )
    weight_bytes = 2 * (2 * (D * H1 + H1 * H2) + 4 * (H1 + 2 * H2 + 1))
    vmem_needed = per_step_bytes + weight_bytes + (2 << 20)
    vmem_limit = vmem_needed if vmem_needed > (24 << 20) else None

    out_row = pl.pallas_call(
        _mlp_kernel,
        out_shape=jax.ShapeDtypeStruct((1, B_round), jnp.float32),
        grid_spec=pltpu.PrefetchScalarGridSpec(
            num_scalar_prefetch=0,
            grid=(n_blocks,),
            in_specs=in_specs,
            out_specs=out_spec,
        ),
        compiler_params=pltpu.CompilerParams(
            dimension_semantics=("parallel",),
            vmem_limit_bytes=vmem_limit,
        ),
        cost_estimate=cost,
    )(x, w1_bf, b1_f, w2_bf, b2_f, w3_row, b3_f)

    # Ragged-last-block columns (>= B) are garbage but never read back; rows are independent,
    # so no masking is needed as long as this kernel stays free of cross-row reductions.
    return out_row[0, :B].reshape(B, 1)


def init_params(key, input_dim, hidden_dim1=128, hidden_dim2=64):
    """Deterministic synthetic parameters (stored [in, out], matching the nn.Linear layers)."""
    ks = jax.random.split(key, 6)
    w1 = jax.random.normal(ks[0], (input_dim, hidden_dim1), jnp.float32) * 0.05
    b1 = jax.random.normal(ks[1], (1, hidden_dim1), jnp.float32) * 0.05
    w2 = jax.random.normal(ks[2], (hidden_dim1, hidden_dim2), jnp.float32) * 0.05
    b2 = jax.random.normal(ks[3], (1, hidden_dim2), jnp.float32) * 0.05
    w3 = jax.random.normal(ks[4], (hidden_dim2, 1), jnp.float32) * 0.05
    b3 = jax.random.normal(ks[5], (1, 1), jnp.float32) * 0.05
    return (w1, b1, w2, b2, w3, b3)


def reference_forward_f32(x, params):
    w1, b1, w2, b2, w3, b3 = params
    h1 = jnp.maximum(x @ w1 + b1, 0.0)
    h2 = jnp.maximum(h1 @ w2 + b2, 0.0)
    return jax.nn.sigmoid(h2 @ w3 + b3)


def reference_forward_bf16(x, params):
    """Reference mirroring the kernel's mixed-precision path (bf16 MXU operands, f32 accum)."""
    w1, b1, w2, b2, w3, b3 = params
    h1 = jnp.dot(x.astype(jnp.bfloat16), w1.astype(jnp.bfloat16),
                 preferred_element_type=jnp.float32) + b1
    h1 = jnp.maximum(h1, 0.0)
    h2 = jnp.dot(h1.astype(jnp.bfloat16), w2.astype(jnp.bfloat16),
                 preferred_element_type=jnp.float32) + b2
    h2 = jnp.maximum(h2, 0.0)
    z = jnp.sum(h2 * w3.T, axis=-1, keepdims=True) + b3
    return jax.nn.sigmoid(z)


if __name__ == "__main__":
    key = jax.random.PRNGKey(0)
    k_x, k_p, k_x2 = jax.random.split(key, 3)

    input_dim = 32
    params = init_params(k_p, input_dim, hidden_dim1=128, hidden_dim2=64)

    # Small case: single grid step (block == full batch rounded to sublane granularity).
    B = 16
    x = jax.random.normal(k_x, (B, input_dim), jnp.float32)
    out = jax.block_until_ready(simple_nn_forward(x, params))
    assert out.shape == (B, 1), out.shape
    assert jnp.allclose(out, reference_forward_bf16(x, params), atol=2e-3, rtol=2e-3), \
        "mismatch vs bf16-path reference (small batch)"
    assert jnp.allclose(out, reference_forward_f32(x, params), atol=3e-2, rtol=3e-2), \
        "mismatch vs f32 reference (small batch)"

    # Larger case: >= 2 grid steps (megacore-shardable) with a ragged last block (no pad).
    B2 = 2072
    x2 = jax.random.normal(k_x2, (B2, input_dim), jnp.float32)
    out2 = jax.block_until_ready(simple_nn_forward(x2, params, block_b=4096))
    assert out2.shape == (B2, 1), out2.shape
    assert jnp.allclose(out2, reference_forward_bf16(x2, params), atol=2e-3, rtol=2e-3), \
        "mismatch vs bf16-path reference (large batch)"

    print("KERNEL_OK")
</pallas_src>

<mosaic_0001>
module attributes {stable_mosaic.version = 11 : i64} {
  func.func @_mlp_kernel(%arg0: i32, %arg1: memref<16x32xf32, #tpu.memory_space<vmem>>, %arg2: memref<32x128xbf16, #tpu.memory_space<vmem>>, %arg3: memref<1x128xf32, #tpu.memory_space<vmem>>, %arg4: memref<128x64xbf16, #tpu.memory_space<vmem>>, %arg5: memref<1x64xf32, #tpu.memory_space<vmem>>, %arg6: memref<1x64xf32, #tpu.memory_space<vmem>>, %arg7: memref<1x1xf32, #tpu.memory_space<vmem>>, %arg8: memref<1x16xf32, #tpu.memory_space<vmem>>) attributes {dimension_semantics = [#tpu.dimension_semantics<parallel>], iteration_bounds = array<i64: 1>, scalar_prefetch = 0 : i64, scratch_operands = 0 : i64, tpu.core_type = #tpu.core_type<tc>, window_params = [{transform_indices = @transform_0, window_bounds = array<i64: 16, 32>}, {pipeline_mode = #tpu.pipeline_mode<synchronous>, transform_indices = @transform_1, window_bounds = array<i64: 32, 128>}, {pipeline_mode = #tpu.pipeline_mode<synchronous>, transform_indices = @transform_2, window_bounds = array<i64: 1, 128>}, {pipeline_mode = #tpu.pipeline_mode<synchronous>, transform_indices = @transform_3, window_bounds = array<i64: 128, 64>}, {pipeline_mode = #tpu.pipeline_mode<synchronous>, transform_indices = @transform_4, window_bounds = array<i64: 1, 64>}, {pipeline_mode = #tpu.pipeline_mode<synchronous>, transform_indices = @transform_5, window_bounds = array<i64: 1, 64>}, {pipeline_mode = #tpu.pipeline_mode<synchronous>, transform_indices = @transform_6, window_bounds = array<i64: 1, 1>}, {transform_indices = @transform_7, window_bounds = array<i64: 1, 16>}]} {
    %c0 = arith.constant 0 : index
    %c0_0 = arith.constant 0 : index
    %0 = vector.load %arg1[%c0, %c0_0] : memref<16x32xf32, #tpu.memory_space<vmem>>, vector<16x32xf32>
    %1 = arith.truncf %0 : vector<16x32xf32> to vector<16x32xbf16>
    %c0_1 = arith.constant 0 : index
    %c0_2 = arith.constant 0 : index
    %2 = vector.load %arg2[%c0_1, %c0_2] : memref<32x128xbf16, #tpu.memory_space<vmem>>, vector<32x128xbf16>
    %cst = arith.constant dense<0.000000e+00> : vector<16x128xf32>
    %3 = tpu.matmul %1, %2, %cst {dimension_numbers = #tpu.dot_dimension_numbers<[1], [0], [0], [1], [0, 0, 1, 1], [], []>} : vector<16x32xbf16>, vector<32x128xbf16>, vector<16x128xf32> -> vector<16x128xf32>
    %c0_3 = arith.constant 0 : index
    %c0_4 = arith.constant 0 : index
    %4 = vector.load %arg3[%c0_3, %c0_4] : memref<1x128xf32, #tpu.memory_space<vmem>>, vector<1x128xf32>
    %5 = vector.broadcast %4 : vector<1x128xf32> to vector<16x128xf32>
    %6 = arith.addf %3, %5 : vector<16x128xf32>
    %cst_5 = arith.constant 0.000000e+00 : f32
    %7 = vector.broadcast %cst_5 : f32 to vector<16x128xf32>
    %8 = arith.maximumf %6, %7 : vector<16x128xf32>
    %9 = arith.truncf %8 : vector<16x128xf32> to vector<16x128xbf16>
    %c0_6 = arith.constant 0 : index
    %c0_7 = arith.constant 0 : index
    %10 = vector.load %arg4[%c0_6, %c0_7] : memref<128x64xbf16, #tpu.memory_space<vmem>>, vector<128x64xbf16>
    %cst_8 = arith.constant dense<0.000000e+00> : vector<16x64xf32>
    %11 = tpu.matmul %9, %10, %cst_8 {dimension_numbers = #tpu.dot_dimension_numbers<[1], [0], [0], [1], [0, 0, 1, 1], [], []>} : vector<16x128xbf16>, vector<128x64xbf16>, vector<16x64xf32> -> vector<16x64xf32>
    %c0_9 = arith.constant 0 : index
    %c0_10 = arith.constant 0 : index
    %12 = vector.load %arg5[%c0_9, %c0_10] : memref<1x64xf32, #tpu.memory_space<vmem>>, vector<1x64xf32>
    %13 = vector.broadcast %12 : vector<1x64xf32> to vector<16x64xf32>
    %14 = arith.addf %11, %13 : vector<16x64xf32>
    %cst_11 = arith.constant 0.000000e+00 : f32
    %15 = vector.broadcast %cst_11 : f32 to vector<16x64xf32>
    %16 = arith.maximumf %14, %15 : vector<16x64xf32>
    %c0_12 = arith.constant 0 : index
    %c0_13 = arith.constant 0 : index
    %17 = vector.load %arg6[%c0_12, %c0_13] : memref<1x64xf32, #tpu.memory_space<vmem>>, vector<1x64xf32>
    %cst_14 = arith.constant dense<0.000000e+00> : vector<1x16xf32>
    %18 = tpu.matmul %17, %16, %cst_14 {dimension_numbers = #tpu.dot_dimension_numbers<[1], [1], [0], [0], [0, 0, 1, 0], [], []>} : vector<1x64xf32>, vector<16x64xf32>, vector<1x16xf32> -> vector<1x16xf32>
    %c0_15 = arith.constant 0 : index
    %c0_16 = arith.constant 0 : index
    %19 = vector.load %arg7[%c0_15, %c0_16] : memref<1x1xf32, #tpu.memory_space<vmem>>, vector<1x1xf32>
    %20 = vector.broadcast %19 : vector<1x1xf32> to vector<1x16xf32>
    %21 = arith.addf %18, %20 : vector<1x16xf32>
    %22 = arith.negf %21 : vector<1x16xf32>
    %23 = math.exp %22 : vector<1x16xf32>
    %cst_17 = arith.constant 1.000000e+00 : f32
    %24 = vector.broadcast %cst_17 : f32 to vector<1x16xf32>
    %25 = arith.addf %24, %23 : vector<1x16xf32>
    %26 = arith.divf %24, %25 : vector<1x16xf32>
    %c0_18 = arith.constant 0 : index
    %c0_19 = arith.constant 0 : index
    %27 = vector.load %arg8[%c0_18, %c0_19] : memref<1x16xf32, #tpu.memory_space<vmem>>, vector<1x16xf32>
    tpu.vector_store %arg8[%c0_18, %c0_19], %26 {strides = array<i32>} : memref<1x16xf32, #tpu.memory_space<vmem>>, vector<1x16xf32>,
    return
  }
  func.func @transform_0(%arg0: i32) -> (i32, i32) {
    %c0_i32 = arith.constant 0 : i32
    %c0_i32_0 = arith.constant 0 : i32
    return %arg0, %c0_i32 : i32, i32
  }
  func.func @transform_1(%arg0: i32) -> (i32, i32) {
    %c0_i32 = arith.constant 0 : i32
    %c0_i32_0 = arith.constant 0 : i32
    %c0_i32_1 = arith.constant 0 : i32
    return %c0_i32, %c0_i32_0 : i32, i32
  }
  func.func @transform_2(%arg0: i32) -> (i32, i32) {
    %c0_i32 = arith.constant 0 : i32
    %c0_i32_0 = arith.constant 0 : i32
    %c0_i32_1 = arith.constant 0 : i32
    return %c0_i32, %c0_i32_0 : i32, i32
  }
  func.func @transform_3(%arg0: i32) -> (i32, i32) {
    %c0_i32 = arith.constant 0 : i32
    %c0_i32_0 = arith.constant 0 : i32
    %c0_i32_1 = arith.constant 0 : i32
    return %c0_i32, %c0_i32_0 : i32, i32
  }
  func.func @transform_4(%arg0: i32) -> (i32, i32) {
    %c0_i32 = arith.constant 0 : i32
    %c0_i32_0 = arith.constant 0 : i32
    %c0_i32_1 = arith.constant 0 : i32
    return %c0_i32, %c0_i32_0 : i32, i32
  }
  func.func @transform_5(%arg0: i32) -> (i32, i32) {
    %c0_i32 = arith.constant 0 : i32
    %c0_i32_0 = arith.constant 0 : i32
    %c0_i32_1 = arith.constant 0 : i32
    return %c0_i32, %c0_i32_0 : i32, i32
  }
  func.func @transform_6(%arg0: i32) -> (i32, i32) {
    %c0_i32 = arith.constant 0 : i32
    %c0_i32_0 = arith.constant 0 : i32
    %c0_i32_1 = arith.constant 0 : i32
    return %c0_i32, %c0_i32_0 : i32, i32
  }
  func.func @transform_7(%arg0: i32) -> (i32, i32) {
    %c0_i32 = arith.constant 0 : i32
    %c0_i32_0 = arith.constant 0 : i32
    return %c0_i32, %arg0 : i32, i32
  }
}

</mosaic_0001>

<llo_original>
// kernel: simple_nn_forward.1
$region0: #{simple_nn_forward.1}
  #allocation0 [shape = 'u32[]', space=smem, size = 0x4, offset = 0x4, fixed_abs, tag = 'smem constant byte address 0x4 - core index']
  #allocation1 [shape = 'u32[72,128]{1,0:T(1,128)}', space=vmem, size = 0x9000, scoped, tag = 'internal scratch']
  #allocation2 [shape = 'f32[1,1]{1,0:T(1,128)S(1)}', space=vmem, size = 0x200, scoped, tag = 'scoped memory for simple_nn_forward.1']
  %s0 = inlined_call_operand.vmem [shape: f32[16,32], index: 0, kind: input, shape index: {}]
  %s1 = inlined_call_operand.vmem [shape: bf16[32,128], index: 1, kind: input, shape index: {}]
  %s2 = inlined_call_operand.vmem [shape: f32[1,128], index: 2, kind: input, shape index: {}]
  %s3 = inlined_call_operand.vmem [shape: bf16[128,64], index: 3, kind: input, shape index: {}]
  %s4 = inlined_call_operand.vmem [shape: f32[1,64], index: 4, kind: input, shape index: {}]
  %s5 = inlined_call_operand.vmem [shape: f32[1,64], index: 5, kind: input, shape index: {}]
  %s6 = inlined_call_operand.<no memory space> [shape: f32[1,1], index: 6, kind: input, shape index: {}]
  %s7 = inlined_call_operand.hbm [shape: f32[1,16], index: 7, kind: output, shape index: {}]
  %s8 = sld [smem:[#allocation0]]
  $region38: #{simple_nn_forward.1} parent=0
    _
  %s10 = ssub.s32 1, %s8
  %s11 = scalar_select 0, %s10, %s8
  %v12 = vstv %s6
  %13 = vst [vmem:[#allocation2] sm:$0x1] %v12
  $region1: #{simple_nn_forward.1} parent=0
    #allocation3 [shape = 'u8[512]{0}', space=vmem, size = 0x400, scoped, tag = 'output window, operand 0, single buffered']
    #allocation4 [shape = 's32[1]{0}', space=sflag, size = 0x4, scoped, tag = 'scoped memory for simple_nn_forward.1']
    %14 = vsyncpa [#allocation4], 0
    // Predicated region
    $region2: #{simple_nn_forward.1} parent=1 // pred_check
      _
    $region3: #{simple_nn_forward.1} parent=1 // pred_check_branch
      %16 = sbr.rel (0) target = $region5
    $region4: #{simple_nn_forward.1} parent=1 // pred_region
      _
    $region5: #{simple_nn_forward.1} parent=1 // pred_fallthru
      _
    // Predicated region
    $region6: #{simple_nn_forward.1} parent=1 // pred_check
      _
    $region7: #{simple_nn_forward.1} parent=1 // pred_check_branch
      %18 = sbr.rel (0) target = $region9
    $region8: #{simple_nn_forward.1} parent=1 // pred_region
      _
    $region9: #{simple_nn_forward.1} parent=1 // pred_fallthru
      _
    // Predicated region
    $region10: #{simple_nn_forward.1} parent=1 // pred_check
      _
    $region11: #{simple_nn_forward.1} parent=1 // pred_check_branch
      %20 = sbr.rel (0) target = $region13
    $region12: #{simple_nn_forward.1} parent=1 // pred_region
      _
    $region13: #{simple_nn_forward.1} parent=1 // pred_fallthru
      _
    // Predicated region
    $region14: #{simple_nn_forward.1} parent=1 // pred_check
      _
    $region15: #{simple_nn_forward.1} parent=1 // pred_check_branch
      %22 = sbr.rel (0) target = $region17
    $region16: #{simple_nn_forward.1} parent=1 // pred_region
      _
    $region17: #{simple_nn_forward.1} parent=1 // pred_fallthru
      _
    // Predicated region
    $region18: #{simple_nn_forward.1} parent=1 // pred_check
      _
    $region19: #{simple_nn_forward.1} parent=1 // pred_check_branch
      %24 = sbr.rel (0) target = $region21
    $region20: #{simple_nn_forward.1} parent=1 // pred_region
      _
    $region21: #{simple_nn_forward.1} parent=1 // pred_fallthru
      _
    // Predicated region
    $region22: #{simple_nn_forward.1} parent=1 // pred_check
      _
    $region23: #{simple_nn_forward.1} parent=1 // pred_check_branch
      %26 = sbr.rel (0) target = $region25
    $region24: #{simple_nn_forward.1} parent=1 // pred_region
      _
    $region25: #{simple_nn_forward.1} parent=1 // pred_fallthru
      _
    // Predicated region
    $region26: #{simple_nn_forward.1} parent=1 // pred_check
      _
    $region27: #{simple_nn_forward.1} parent=1 // pred_check_branch
      %28 = sbr.rel (0) target = $region29
    $region28: #{simple_nn_forward.1} parent=1 // pred_region
      _
    $region29: #{simple_nn_forward.1} parent=1 // pred_fallthru
      _
    %v30 = vld [vmem:[%s0] sm:$0xff]
    %v31 = vld [vmem:[%s0 + $0x8] sm:$0xff]
    %v32 = vpack.c.bf16 %v31, %v30
    %v33 = vld [vmem:[%s1] sm:$0xf]
    %v34 = vld [vmem:[%s1 + $0x4] sm:$0xf]
    %v35 = vld [vmem:[%s1 + $0x8] sm:$0xf]
    %v36 = vld [vmem:[%s1 + $0xc] sm:$0xf]
    %v37 = vld [vmem:[%s2] sm:$0x1]
    %v39 = vperm.slane %v37, 0
    %v45 = vunpack.c.l.b16 %v33
    %v46 = vunpack.c.l.b16 %v34
    %v47 = vunpack.c.l.b16 %v35
    %v48 = vunpack.c.l.b16 %v36
    %v49 = vpack.c.b16 %v46, %v45
    %v50 = vpack.c.b16 %v48, %v47
    %vm53 = vcmask 261120
    %v55 = vsel %vm53, %v32, 0
    %57 = vmatpush.bf16.msra.mxu0 0
    %58 = vmatpush.bf16.msra.mxu0 0
    %59 = vmatpush.bf16.msra.mxu0 0
    %60 = vmatpush.bf16.msra.mxu0 0
    %61 = vmatpush.bf16.msra.mxu0 0
    %62 = vmatpush.bf16.msra.mxu0 0
    %63 = vmatpush.bf16.msra.mxu0 %v50
    %64 = vmatpush.bf16.msra.mxu0 %v49
    %65 = vmatmul.bf16.gmra.mxu0 %v55
    %v66 = vpop.f32.mrf.mxu0
    %v67 = vadd.f32 %v39, %v66
    %v68 = vpop.f32.mrf.mxu0
    %v69 = vadd.f32 %v39, %v68
    %70 = vdwg.mxu0
    %v71 = vmax.f32 %v67, 0.0
    %v72 = vmax.f32 %v69, 0.0
    %v73 = vpack.c.bf16 %v72, %v71
    %v74 = vld [vmem:[%s3] sm:$0xf]
    %v75 = vld [vmem:[%s3 + $0x4] sm:$0xf]
    %v76 = vld [vmem:[%s3 + $0x8] sm:$0xf]
    %v77 = vld [vmem:[%s3 + $0xc] sm:$0xf]
    %v78 = vld [vmem:[%s3 + $0x10] sm:$0xf]
    %v79 = vld [vmem:[%s3 + $0x14] sm:$0xf]
    %v80 = vld [vmem:[%s3 + $0x18] sm:$0xf]
    %v81 = vld [vmem:[%s3 + $0x1c] sm:$0xf]
    %v82 = vld [vmem:[%s3 + $0x20] sm:$0xf]
    %v83 = vld [vmem:[%s3 + $0x24] sm:$0xf]
    %v84 = vld [vmem:[%s3 + $0x28] sm:$0xf]
    %v85 = vld [vmem:[%s3 + $0x2c] sm:$0xf]
    %v86 = vld [vmem:[%s3 + $0x30] sm:$0xf]
    %v87 = vld [vmem:[%s3 + $0x34] sm:$0xf]
    %v88 = vld [vmem:[%s3 + $0x38] sm:$0xf]
    %v89 = vld [vmem:[%s3 + $0x3c] sm:$0xf]
    %v90 = vld [vmem:[%s4] sm:$0x1]
    %v92 = vperm.slane %v90, 0
    %v110 = vunpack.c.l.b16 %v74
    %v111 = vunpack.c.l.b16 %v75
    %v112 = vunpack.c.l.b16 %v76
    %v113 = vunpack.c.l.b16 %v77
    %v114 = vunpack.c.l.b16 %v78
    %v115 = vunpack.c.l.b16 %v79
    %v116 = vunpack.c.l.b16 %v80
    %v117 = vunpack.c.l.b16 %v81
    %v118 = vunpack.c.l.b16 %v82
    %v119 = vunpack.c.l.b16 %v83
    %v120 = vunpack.c.l.b16 %v84
    %v121 = vunpack.c.l.b16 %v85
    %v122 = vunpack.c.l.b16 %v86
    %v123 = vunpack.c.l.b16 %v87
    %v124 = vunpack.c.l.b16 %v88
    %v125 = vunpack.c.l.b16 %v89
    %v126 = vpack.c.b16 %v111, %v110
    %v127 = vpack.c.b16 %v113, %v112
    %v128 = vpack.c.b16 %v115, %v114
    %v129 = vpack.c.b16 %v117, %v116
    %v130 = vpack.c.b16 %v119, %v118
    %v131 = vpack.c.b16 %v121, %v120
    %v132 = vpack.c.b16 %v123, %v122
    %v133 = vpack.c.b16 %v125, %v124
    %142 = vmatpush.bf16.msra.mxu0 %v133
    %143 = vmatpush.bf16.msra.mxu0 %v132
    %144 = vmatpush.bf16.msra.mxu0 %v131
    %145 = vmatpush.bf16.msra.mxu0 %v130
    %146 = vmatpush.bf16.msra.mxu0 %v129
    %147 = vmatpush.bf16.msra.mxu0 %v128
    %148 = vmatpush.bf16.msra.mxu0 %v127
    %149 = vmatpush.bf16.msra.mxu0 %v126
    %150 = vmatmul.bf16.gmra.mxu0 %v73
    %v151 = vpop.f32.mrf.mxu0
    %v152 = vadd.f32 %v92, %v151
    %v153 = vpop.f32.mrf.mxu0
    %v154 = vadd.f32 %v92, %v153
    %155 = vdwg.mxu0
    %v156 = vmax.f32 %v152, 0.0
    %v157 = vmax.f32 %v154, 0.0
    %v158 = vld [vmem:[%s5] sm:$0x1]
    %v159 = vld [vmem:[#allocation2] sm:$0x1]
    %161 = vset.pattern.permute.xlu0 0
    %162 = vperm.xlu0 %161, %v159
    %v163 = vpop.permute.xlu0 %162
    %v165 = vperm.slane %v163, 0
    %vm166 = vcmask 523264
    %v168 = vsel %vm166, %v158, 0
    %v171 = vsel %vm166, %v156, 0
    %v174 = vsel %vm166, %v157, 0
    %176 = vmatpush.xpose.msra.mxu0 0.0
    %177 = vmatpush.xpose.msra.mxu0 0.0
    %178 = vmatpush.xpose.msra.mxu0 0.0
    %179 = vmatpush.xpose.msra.mxu0 0.0
    %180 = vmatpush.xpose.msra.mxu0 0.0
    %181 = vmatpush.xpose.msra.mxu0 0.0
    %182 = vmatpush.xpose.msra.mxu0 0.0
    %183 = vmatpush.xpose.msra.mxu0 0.0
    %184 = vmatpush.xpose.msra.mxu0 0.0
    %185 = vmatpush.xpose.msra.mxu0 0.0
    %186 = vmatpush.xpose.msra.mxu0 0.0
    %187 = vmatpush.xpose.msra.mxu0 0.0
    %188 = vmatpush.xpose.msra.mxu0 0.0
    %189 = vmatpush.xpose.msra.mxu0 0.0
    %190 = vmatpush.xpose.msra.mxu0 %v174
    %191 = vmatpush.xpose.msra.mxu0 %v171
    %192 = vmatmul.f32.gmra.mxu0 %v168
    %v193 = vpop.f32.mrf.mxu0
    %v194 = vadd.f32 %v165, %v193
    %195 = vdwg.mxu0
    %v196 = vxor.u32 %v194, 2147483648
    %v197 = vmul.f32 %v196, 1.442695
    %v198 = vpow.pop %v197
    %v199 = vadd.f32 %v198, 1.0
    %v200 = vrcp.pop %v199
    %v201 = vmul.f32 %v199, %v200
    %v202 = vsub.f32 1.0, %v201
    %v203 = vmul.f32 %v200, %v202
    %v204 = vadd.f32 %v200, %v203
    %vm205 = vweird.f32 %v199
    %vm206 = vweird.f32 %v200
    %vm207 = vmor %vm205, %vm206
    %v208 = vsel %vm207, %v200, %v204
    %v209 = vand.u32 2147483647, %v199
    %vm210 = vcmp.eq.f32.partialorder %v209, 8.507059e+37
    %v211 = vand.u32 %v199, 2147483648
    %v212 = vor.u32 1.1754944e-38, %v211
    %v213 = vsel %vm210, %v212, %v208
    %v214 = vmul.f32 1.0, %v213
    %vm215 = vcmask 122880
    %216 = vst.msk [vmem:[#allocation3] sm:$0x1] %vm215, %v214
    // Predicated region
    $region30: #{simple_nn_forward.1} parent=1 // pred_check
      _
    $region31: #{simple_nn_forward.1} parent=1 // pred_check_branch
      %218 = sbr.rel (0) target = $region33
    $region32: #{simple_nn_forward.1} parent=1 // pred_region
      %220 = vsyncadd [#allocation4], 0
      %s222 = sshll.u32 [#allocation3], 4
      %s223 = int_to_ptr.vmem [resolvable:$true] %s222
      %s224 = sshll.u32 %s7, 4
      %s225 = int_to_ptr.hbm [resolvable:$true] %s224
      %227 = dma.vmem_to_hbm [thread:$0]  %s223, 16, %s225, [#allocation4]
    $region33: #{simple_nn_forward.1} parent=1 // pred_fallthru
      _
    // Predicated region
    $region34: #{simple_nn_forward.1} parent=1 // pred_check
      _
    $region35: #{simple_nn_forward.1} parent=1 // pred_check_branch
      %229 = sbr.rel (0) target = $region37
    $region36: #{simple_nn_forward.1} parent=1 // pred_region
      %231 = dma.done [#allocation4], 16
    $region37: #{simple_nn_forward.1} parent=1 // pred_fallthru
      _
    %232 = vsyncpa [#allocation4], 1

</llo_original>
